<compile_context>
chip_gen: v7x
topology: tpu7x:2x2x1
jax: 0.10.0
libtpu: 0.0.40
codegen_flags: <defaults>
</compile_context>

<pallas_src>
import functools

import jax
import jax.numpy as jnp
from jax.experimental import pallas as pl
from jax.experimental.pallas import tpu as pltpu

LANE = 128


def _round_up(x, m):
    return ((x + m - 1) // m) * m


def mlp_kernel(x_ref, w1_ref, b1_ref, w2_ref, b2_ref, w3_ref, b3_ref, o_ref,
               *, elementwise_dtype):
    ew = elementwise_dtype

    # Hoist bias loads once per grid step; biases are (out, 1) columns that broadcast
    # along the lane (batch) axis.
    b1 = b1_ref[...].astype(ew)          # (64, 1)
    b2 = b2_ref[...].astype(ew)          # (32, 1)
    b3 = b3_ref[...]                     # (2, 1), f32

    xt = x_ref[...]                      # (input_dim, tile_b): batch on lanes

    # fc1 + ReLU: weights as MXU LHS, f32 accumulation, elementwise in `ew`.
    h1 = jnp.dot(w1_ref[...], xt, preferred_element_type=jnp.float32)   # (64, tile_b)
    h1 = jnp.maximum(h1.astype(ew) + b1, 0.0)

    # dropout(p=0.5): identity in eval/inference mode.
    # TODO(synk): training-mode dropout (pltpu.prng_seed + prng_random_bits mask,
    # 1/(1-p) scaling) not emitted.

    # fc2 + ReLU.
    h2 = jnp.dot(w2_ref[...], h1.astype(w2_ref.dtype),
                 preferred_element_type=jnp.float32)                    # (32, tile_b)
    h2 = jnp.maximum(h2.astype(ew) + b2, 0.0)

    # fc3 (logits), f32 output.  Lane-dense (2, tile_b) store.
    o = jnp.dot(w3_ref[...], h2.astype(w3_ref.dtype),
                preferred_element_type=jnp.float32)                     # (2, tile_b)
    o_ref[...] = o + b3


def neural_net_forward(x, params, *, tile_b=8192, use_bf16=True, bf16_elementwise=True):
    """x: (B, input_dim) f32.  params: torch-layout (W1,b1,W2,b2,W3,b3).  Returns (B, 2) f32."""
    w1, b1, w2, b2, w3, b3 = params
    B, input_dim = x.shape
    h1_dim, h2_dim, out_dim = w1.shape[0], w2.shape[0], w3.shape[0]

    compute_dtype = jnp.bfloat16 if use_bf16 else jnp.float32
    ew_dtype = jnp.bfloat16 if (use_bf16 and bf16_elementwise) else jnp.float32

    # Batch-on-lanes: transpose x once in the wrapper (layout plumbing, not compute).
    xt = x.astype(compute_dtype).T                               # (input_dim, B)
    w1c, w2c, w3c = (w.astype(compute_dtype) for w in (w1, w2, w3))
    b1c, b2c, b3c = (b.astype(jnp.float32).reshape(-1, 1) for b in (b1, b2, b3))

    # Batch tile on the lane axis: multiple of 128, clamped by the padded batch.
    b_ceil = _round_up(B, LANE)
    tile_b = max(LANE, min(_round_up(tile_b, LANE), b_ceil))
    # Prefer >= 2 grid steps when the batch allows, so v7x's second TensorCore gets work.
    if tile_b >= b_ceil and b_ceil >= 2 * LANE:
        tile_b = _round_up(b_ceil // 2, LANE)
    b_padded = _round_up(B, tile_b)
    if b_padded != B:
        # Padded columns produce non-zero values (bias propagates through ReLU); they are
        # computed harmlessly and sliced off below.
        xt = jnp.pad(xt, ((0, 0), (0, b_padded - B)))
    grid = (b_padded // tile_b,)

    # Weights/biases: full-array blocks with a constant index_map -> VMEM-resident across
    # all grid steps.  Only x (per-step block) and the output stream through the pipeline.
    resident = lambda shape: pl.BlockSpec(shape, lambda i: (0,) * len(shape))

    flops = 2 * b_padded * (input_dim * h1_dim + h1_dim * h2_dim + h2_dim * out_dim)
    bytes_accessed = (
        xt.size * xt.dtype.itemsize
        + sum(a.size * a.dtype.itemsize for a in (w1c, b1c, w2c, b2c, w3c, b3c))
        + b_padded * out_dim * 4
    )

    out_t = pl.pallas_call(
        functools.partial(mlp_kernel, elementwise_dtype=ew_dtype),
        out_shape=jax.ShapeDtypeStruct((out_dim, b_padded), jnp.float32),
        grid=grid,
        in_specs=[
            # x^T is the only per-grid-step stream (double-buffered by Pallas).
            pl.BlockSpec((input_dim, tile_b), lambda i: (0, i)),
            resident(w1c.shape), resident(b1c.shape),
            resident(w2c.shape), resident(b2c.shape),
            resident(w3c.shape), resident(b3c.shape),
        ],
        out_specs=pl.BlockSpec((out_dim, tile_b), lambda i: (0, i)),
        compiler_params=pltpu.CompilerParams(
            # Megacore sharding of the batch axis on v7x; harmless on v5e/v6e.
            # If xprof shows only one TC busy, switch to pltpu.CORE_PARALLEL.
            dimension_semantics=("parallel",),
        ),
        cost_estimate=pl.CostEstimate(
            flops=flops, transcendentals=0, bytes_accessed=bytes_accessed),
    )(xt, w1c, b1c, w2c, b2c, w3c, b3c)

    out = out_t[:, :B].T                                         # back to (B, 2)
    return out


def init_params(key, input_dim):
    """Deterministic init mimicking nn.Linear's uniform(-1/sqrt(fan_in), 1/sqrt(fan_in)).

    Torch layout: W (out, in), b (out,)."""
    def linear(key, fan_in, fan_out):
        kw, kb = jax.random.split(key)
        bound = 1.0 / jnp.sqrt(fan_in)
        w = jax.random.uniform(kw, (fan_out, fan_in), jnp.float32, -bound, bound)
        b = jax.random.uniform(kb, (fan_out,), jnp.float32, -bound, bound)
        return w, b

    k1, k2, k3 = jax.random.split(key, 3)
    w1, b1 = linear(k1, input_dim, 64)
    w2, b2 = linear(k2, 64, 32)
    w3, b3 = linear(k3, 32, 2)
    return (w1, b1, w2, b2, w3, b3)


def reference_forward(x, params, use_bf16=True, bf16_elementwise=True):
    """Plain-JAX reference at matched precision (y = x @ W.T + b, torch semantics)."""
    w1, b1, w2, b2, w3, b3 = params
    cd = jnp.bfloat16 if use_bf16 else jnp.float32
    ew = jnp.bfloat16 if (use_bf16 and bf16_elementwise) else jnp.float32

    def layer(a, w, b, relu):
        y = jnp.dot(a.astype(cd), w.T.astype(cd), preferred_element_type=jnp.float32)
        if relu:
            return jnp.maximum(y.astype(ew) + b.astype(ew), 0.0).astype(jnp.float32)
        return y + b.astype(jnp.float32)

    h = layer(x, w1, b1, relu=True)
    h = layer(h, w2, b2, relu=True)   # dropout = identity (eval mode)
    return layer(h, w3, b3, relu=False)


if __name__ == "__main__":
    key = jax.random.PRNGKey(0)
    k_params, k_x = jax.random.split(key)

    batch, input_dim = 8, 32
    params = init_params(k_params, input_dim)
    x = jax.random.normal(k_x, (batch, input_dim), jnp.float32)

    out = neural_net_forward(x, params)
    out = jax.block_until_ready(out)

    assert out.shape == (batch, 2)

    # Matched-precision reference (bf16 matmul inputs + bf16 elementwise, f32 accumulation).
    ref = reference_forward(x, params)
    assert jnp.allclose(out, ref, atol=1e-3, rtol=1e-3), float(jnp.max(jnp.abs(out - ref)))

    # Pure-f32 math (looser tolerance for the bf16 compute path).
    ref_f32 = reference_forward(x, params, use_bf16=False)
    assert jnp.allclose(out, ref_f32, atol=5e-2, rtol=5e-2), \
        float(jnp.max(jnp.abs(out - ref_f32)))

    print("KERNEL_OK")
</pallas_src>

<mosaic_0001>
module attributes {stable_mosaic.version = 11 : i64} {
  func.func @mlp_kernel(%arg0: i32, %arg1: memref<32x128xbf16, #tpu.memory_space<vmem>>, %arg2: memref<64x32xbf16, #tpu.memory_space<vmem>>, %arg3: memref<64x1xf32, #tpu.memory_space<vmem>>, %arg4: memref<32x64xbf16, #tpu.memory_space<vmem>>, %arg5: memref<32x1xf32, #tpu.memory_space<vmem>>, %arg6: memref<2x32xbf16, #tpu.memory_space<vmem>>, %arg7: memref<2x1xf32, #tpu.memory_space<vmem>>, %arg8: memref<2x128xf32, #tpu.memory_space<vmem>>) attributes {dimension_semantics = [#tpu.dimension_semantics<parallel>], iteration_bounds = array<i64: 1>, scalar_prefetch = 0 : i64, scratch_operands = 0 : i64, tpu.core_type = #tpu.core_type<tc>, window_params = [{transform_indices = @transform_0, window_bounds = array<i64: 32, 128>}, {pipeline_mode = #tpu.pipeline_mode<synchronous>, transform_indices = @transform_1, window_bounds = array<i64: 64, 32>}, {pipeline_mode = #tpu.pipeline_mode<synchronous>, transform_indices = @transform_2, window_bounds = array<i64: 64, 1>}, {pipeline_mode = #tpu.pipeline_mode<synchronous>, transform_indices = @transform_3, window_bounds = array<i64: 32, 64>}, {pipeline_mode = #tpu.pipeline_mode<synchronous>, transform_indices = @transform_4, window_bounds = array<i64: 32, 1>}, {pipeline_mode = #tpu.pipeline_mode<synchronous>, transform_indices = @transform_5, window_bounds = array<i64: 2, 32>}, {pipeline_mode = #tpu.pipeline_mode<synchronous>, transform_indices = @transform_6, window_bounds = array<i64: 2, 1>}, {transform_indices = @transform_7, window_bounds = array<i64: 2, 128>}]} {
    %c0 = arith.constant 0 : index
    %c0_0 = arith.constant 0 : index
    %0 = vector.load %arg3[%c0, %c0_0] : memref<64x1xf32, #tpu.memory_space<vmem>>, vector<64x1xf32>
    %1 = arith.truncf %0 : vector<64x1xf32> to vector<64x1xbf16>
    %c0_1 = arith.constant 0 : index
    %c0_2 = arith.constant 0 : index
    %2 = vector.load %arg5[%c0_1, %c0_2] : memref<32x1xf32, #tpu.memory_space<vmem>>, vector<32x1xf32>
    %3 = arith.truncf %2 : vector<32x1xf32> to vector<32x1xbf16>
    %c0_3 = arith.constant 0 : index
    %c0_4 = arith.constant 0 : index
    %4 = vector.load %arg7[%c0_3, %c0_4] : memref<2x1xf32, #tpu.memory_space<vmem>>, vector<2x1xf32>
    %c0_5 = arith.constant 0 : index
    %c0_6 = arith.constant 0 : index
    %5 = vector.load %arg1[%c0_5, %c0_6] : memref<32x128xbf16, #tpu.memory_space<vmem>>, vector<32x128xbf16>
    %c0_7 = arith.constant 0 : index
    %c0_8 = arith.constant 0 : index
    %6 = vector.load %arg2[%c0_7, %c0_8] : memref<64x32xbf16, #tpu.memory_space<vmem>>, vector<64x32xbf16>
    %cst = arith.constant dense<0.000000e+00> : vector<64x128xf32>
    %7 = tpu.matmul %6, %5, %cst {dimension_numbers = #tpu.dot_dimension_numbers<[1], [0], [0], [1], [0, 0, 1, 1], [], []>} : vector<64x32xbf16>, vector<32x128xbf16>, vector<64x128xf32> -> vector<64x128xf32>
    %8 = arith.truncf %7 : vector<64x128xf32> to vector<64x128xbf16>
    %9 = vector.broadcast %1 : vector<64x1xbf16> to vector<64x128xbf16>
    %10 = arith.addf %8, %9 : vector<64x128xbf16>
    %cst_9 = arith.constant 0.000000e+00 : bf16
    %11 = vector.broadcast %cst_9 : bf16 to vector<64x128xbf16>
    %12 = arith.maximumf %10, %11 : vector<64x128xbf16>
    %c0_10 = arith.constant 0 : index
    %c0_11 = arith.constant 0 : index
    %13 = vector.load %arg4[%c0_10, %c0_11] : memref<32x64xbf16, #tpu.memory_space<vmem>>, vector<32x64xbf16>
    %cst_12 = arith.constant dense<0.000000e+00> : vector<32x128xf32>
    %14 = tpu.matmul %13, %12, %cst_12 {dimension_numbers = #tpu.dot_dimension_numbers<[1], [0], [0], [1], [0, 0, 1, 1], [], []>} : vector<32x64xbf16>, vector<64x128xbf16>, vector<32x128xf32> -> vector<32x128xf32>
    %15 = arith.truncf %14 : vector<32x128xf32> to vector<32x128xbf16>
    %16 = vector.broadcast %3 : vector<32x1xbf16> to vector<32x128xbf16>
    %17 = arith.addf %15, %16 : vector<32x128xbf16>
    %cst_13 = arith.constant 0.000000e+00 : bf16
    %18 = vector.broadcast %cst_13 : bf16 to vector<32x128xbf16>
    %19 = arith.maximumf %17, %18 : vector<32x128xbf16>
    %c0_14 = arith.constant 0 : index
    %c0_15 = arith.constant 0 : index
    %20 = vector.load %arg6[%c0_14, %c0_15] : memref<2x32xbf16, #tpu.memory_space<vmem>>, vector<2x32xbf16>
    %cst_16 = arith.constant dense<0.000000e+00> : vector<2x128xf32>
    %21 = tpu.matmul %20, %19, %cst_16 {dimension_numbers = #tpu.dot_dimension_numbers<[1], [0], [0], [1], [0, 0, 1, 1], [], []>} : vector<2x32xbf16>, vector<32x128xbf16>, vector<2x128xf32> -> vector<2x128xf32>
    %22 = vector.broadcast %4 : vector<2x1xf32> to vector<2x128xf32>
    %23 = arith.addf %21, %22 : vector<2x128xf32>
    %c0_17 = arith.constant 0 : index
    %c0_18 = arith.constant 0 : index
    %24 = vector.load %arg8[%c0_17, %c0_18] : memref<2x128xf32, #tpu.memory_space<vmem>>, vector<2x128xf32>
    tpu.vector_store %arg8[%c0_17, %c0_18], %23 {strides = array<i32>} : memref<2x128xf32, #tpu.memory_space<vmem>>, vector<2x128xf32>,
    return
  }
  func.func @transform_0(%arg0: i32) -> (i32, i32) {
    %c0_i32 = arith.constant 0 : i32
    %c0_i32_0 = arith.constant 0 : i32
    return %c0_i32, %arg0 : i32, i32
  }
  func.func @transform_1(%arg0: i32) -> (i32, i32) {
    %c0_i32 = arith.constant 0 : i32
    %c0_i32_0 = arith.constant 0 : i32
    %c0_i32_1 = arith.constant 0 : i32
    return %c0_i32, %c0_i32_0 : i32, i32
  }
  func.func @transform_2(%arg0: i32) -> (i32, i32) {
    %c0_i32 = arith.constant 0 : i32
    %c0_i32_0 = arith.constant 0 : i32
    %c0_i32_1 = arith.constant 0 : i32
    return %c0_i32, %c0_i32_0 : i32, i32
  }
  func.func @transform_3(%arg0: i32) -> (i32, i32) {
    %c0_i32 = arith.constant 0 : i32
    %c0_i32_0 = arith.constant 0 : i32
    %c0_i32_1 = arith.constant 0 : i32
    return %c0_i32, %c0_i32_0 : i32, i32
  }
  func.func @transform_4(%arg0: i32) -> (i32, i32) {
    %c0_i32 = arith.constant 0 : i32
    %c0_i32_0 = arith.constant 0 : i32
    %c0_i32_1 = arith.constant 0 : i32
    return %c0_i32, %c0_i32_0 : i32, i32
  }
  func.func @transform_5(%arg0: i32) -> (i32, i32) {
    %c0_i32 = arith.constant 0 : i32
    %c0_i32_0 = arith.constant 0 : i32
    %c0_i32_1 = arith.constant 0 : i32
    return %c0_i32, %c0_i32_0 : i32, i32
  }
  func.func @transform_6(%arg0: i32) -> (i32, i32) {
    %c0_i32 = arith.constant 0 : i32
    %c0_i32_0 = arith.constant 0 : i32
    %c0_i32_1 = arith.constant 0 : i32
    return %c0_i32, %c0_i32_0 : i32, i32
  }
  func.func @transform_7(%arg0: i32) -> (i32, i32) {
    %c0_i32 = arith.constant 0 : i32
    %c0_i32_0 = arith.constant 0 : i32
    return %c0_i32, %arg0 : i32, i32
  }
}

</mosaic_0001>

<llo_original>
// kernel: tpu_custom_call.1
$region0: #{tpu_custom_call.1}
  #allocation0 [shape = 'u32[]', space=smem, size = 0x4, offset = 0x4, fixed_abs, tag = 'smem constant byte address 0x4 - core index']
  #allocation1 [shape = 'u32[144,128]{1,0:T(1,128)}', space=vmem, size = 0x12000, scoped, tag = 'internal scratch']
  %s0 = inlined_call_operand.vmem [shape: bf16[32,128], index: 0, kind: input, shape index: {}]
  %s1 = inlined_call_operand.vmem [shape: bf16[64,32], index: 1, kind: input, shape index: {}]
  %s2 = inlined_call_operand.vmem [shape: f32[64,1], index: 2, kind: input, shape index: {}]
  %s3 = inlined_call_operand.vmem [shape: bf16[32,64], index: 3, kind: input, shape index: {}]
  %s4 = inlined_call_operand.vmem [shape: f32[32,1], index: 4, kind: input, shape index: {}]
  %s5 = inlined_call_operand.vmem [shape: bf16[2,32], index: 5, kind: input, shape index: {}]
  %s6 = inlined_call_operand.vmem [shape: f32[2,1], index: 6, kind: input, shape index: {}]
  %s7 = inlined_call_operand.hbm [shape: f32[2,128], index: 7, kind: output, shape index: {}]
  %s8 = sld [smem:[#allocation0]]
  $region38: #{tpu_custom_call.1} parent=0
    _
  %s10 = ssub.s32 1, %s8
  %s11 = scalar_select 0, %s10, %s8
  $region1: #{tpu_custom_call.1} parent=0
    #allocation2 [shape = 'u8[1024]{0}', space=vmem, size = 0x400, scoped, tag = 'output window, operand 0, single buffered']
    #allocation3 [shape = 's32[1]{0}', space=sflag, size = 0x4, scoped, tag = 'scoped memory for tpu_custom_call.1']
    %12 = vsyncpa [#allocation3], 0
    // Predicated region
    $region2: #{tpu_custom_call.1} parent=1 // pred_check
      _
    $region3: #{tpu_custom_call.1} parent=1 // pred_check_branch
      %14 = sbr.rel (0) target = $region5
    $region4: #{tpu_custom_call.1} parent=1 // pred_region
      _
    $region5: #{tpu_custom_call.1} parent=1 // pred_fallthru
      _
    // Predicated region
    $region6: #{tpu_custom_call.1} parent=1 // pred_check
      _
    $region7: #{tpu_custom_call.1} parent=1 // pred_check_branch
      %16 = sbr.rel (0) target = $region9
    $region8: #{tpu_custom_call.1} parent=1 // pred_region
      _
    $region9: #{tpu_custom_call.1} parent=1 // pred_fallthru
      _
    // Predicated region
    $region10: #{tpu_custom_call.1} parent=1 // pred_check
      _
    $region11: #{tpu_custom_call.1} parent=1 // pred_check_branch
      %18 = sbr.rel (0) target = $region13
    $region12: #{tpu_custom_call.1} parent=1 // pred_region
      _
    $region13: #{tpu_custom_call.1} parent=1 // pred_fallthru
      _
    // Predicated region
    $region14: #{tpu_custom_call.1} parent=1 // pred_check
      _
    $region15: #{tpu_custom_call.1} parent=1 // pred_check_branch
      %20 = sbr.rel (0) target = $region17
    $region16: #{tpu_custom_call.1} parent=1 // pred_region
      _
    $region17: #{tpu_custom_call.1} parent=1 // pred_fallthru
      _
    // Predicated region
    $region18: #{tpu_custom_call.1} parent=1 // pred_check
      _
    $region19: #{tpu_custom_call.1} parent=1 // pred_check_branch
      %22 = sbr.rel (0) target = $region21
    $region20: #{tpu_custom_call.1} parent=1 // pred_region
      _
    $region21: #{tpu_custom_call.1} parent=1 // pred_fallthru
      _
    // Predicated region
    $region22: #{tpu_custom_call.1} parent=1 // pred_check
      _
    $region23: #{tpu_custom_call.1} parent=1 // pred_check_branch
      %24 = sbr.rel (0) target = $region25
    $region24: #{tpu_custom_call.1} parent=1 // pred_region
      _
    $region25: #{tpu_custom_call.1} parent=1 // pred_fallthru
      _
    // Predicated region
    $region26: #{tpu_custom_call.1} parent=1 // pred_check
      _
    $region27: #{tpu_custom_call.1} parent=1 // pred_check_branch
      %26 = sbr.rel (0) target = $region29
    $region28: #{tpu_custom_call.1} parent=1 // pred_region
      _
    $region29: #{tpu_custom_call.1} parent=1 // pred_fallthru
      _
    %v28 = vld [vmem:[%s2] sm:$0xff]
    %v29 = vld [vmem:[%s2 + $0x8] sm:$0xff]
    %v30 = vld [vmem:[%s2 + $0x10] sm:$0xff]
    %v31 = vld [vmem:[%s2 + $0x18] sm:$0xff]
    %v32 = vld [vmem:[%s2 + $0x20] sm:$0xff]
    %v33 = vld [vmem:[%s2 + $0x28] sm:$0xff]
    %v34 = vld [vmem:[%s2 + $0x30] sm:$0xff]
    %v35 = vld [vmem:[%s2 + $0x38] sm:$0xff]
    %v36 = vpack.c.bf16 %v29, %v28
    %v37 = vpack.c.bf16 %v31, %v30
    %v38 = vpack.c.bf16 %v33, %v32
    %v39 = vpack.c.bf16 %v35, %v34
    %v40 = vld [vmem:[%s4] sm:$0xff]
    %v41 = vld [vmem:[%s4 + $0x8] sm:$0xff]
    %v42 = vld [vmem:[%s4 + $0x10] sm:$0xff]
    %v43 = vld [vmem:[%s4 + $0x18] sm:$0xff]
    %v44 = vpack.c.bf16 %v41, %v40
    %v45 = vpack.c.bf16 %v43, %v42
    %v46 = vld [vmem:[%s6] sm:$0x3]
    %v47 = vld [vmem:[%s0] sm:$0xf]
    %v48 = vld [vmem:[%s0 + $0x4] sm:$0xf]
    %v49 = vld [vmem:[%s0 + $0x8] sm:$0xf]
    %v50 = vld [vmem:[%s0 + $0xc] sm:$0xf]
    %v51 = vld [vmem:[%s1] sm:$0xf]
    %v52 = vld [vmem:[%s1 + $0x4] sm:$0xf]
    %v53 = vld [vmem:[%s1 + $0x8] sm:$0xf]
    %v54 = vld [vmem:[%s1 + $0xc] sm:$0xf]
    %v55 = vld [vmem:[%s1 + $0x10] sm:$0xf]
    %v56 = vld [vmem:[%s1 + $0x14] sm:$0xf]
    %v57 = vld [vmem:[%s1 + $0x18] sm:$0xf]
    %v58 = vld [vmem:[%s1 + $0x1c] sm:$0xf]
    %v67 = vunpack.c.l.b16 %v51
    %v68 = vunpack.c.l.b16 %v52
    %v69 = vunpack.c.l.b16 %v53
    %v70 = vunpack.c.l.b16 %v54
    %v71 = vunpack.c.l.b16 %v55
    %v72 = vunpack.c.l.b16 %v56
    %v73 = vunpack.c.l.b16 %v57
    %v74 = vunpack.c.l.b16 %v58
    %v75 = vpack.c.b16 %v68, %v67
    %v76 = vpack.c.b16 %v70, %v69
    %v77 = vpack.c.b16 %v72, %v71
    %v78 = vpack.c.b16 %v74, %v73
    %v83 = vunpack.c.l.b16 %v47
    %v84 = vunpack.c.l.b16 %v48
    %v85 = vunpack.c.l.b16 %v49
    %v86 = vunpack.c.l.b16 %v50
    %v87 = vpack.c.b16 %v84, %v83
    %v88 = vpack.c.b16 %v86, %v85
    %vm91 = vcmask 261120
    %v93 = vsel %vm91, %v75, 0
    %v96 = vsel %vm91, %v76, 0
    %v99 = vsel %vm91, %v77, 0
    %v102 = vsel %vm91, %v78, 0
    %104 = vmatprep.subr.bf16.mxu0 0
    %105 = vmatpush1.bf16.msra.mxu0 %v87
    %106 = vmatprep.subr.bf16.mxu0 0
    %107 = vmatpush1.bf16.msra.mxu0 %v88
    %108 = vmatprep.subr.bf16.mxu0 0
    %109 = vmatpush1.bf16.msra.mxu0 0
    %110 = vmatprep.subr.bf16.mxu0 0
    %111 = vmatpush1.bf16.msra.mxu0 0
    %112 = vmatprep.subr.bf16.mxu0 0
    %113 = vmatpush1.bf16.msra.mxu0 0
    %114 = vmatprep.subr.bf16.mxu0 0
    %115 = vmatpush1.bf16.msra.mxu0 0
    %116 = vmatprep.subr.bf16.mxu0 0
    %117 = vmatpush1.bf16.msra.mxu0 0
    %118 = vmatprep.subr.bf16.mxu0 0
    %119 = vmatpush1.bf16.msra.mxu0 0
    %120 = vmatprep.subr.bf16.mxu0 0
    %121 = vmatpush1.bf16.msra.mxu0 0
    %122 = vmatprep.subr.bf16.mxu0 0
    %123 = vmatpush1.bf16.msra.mxu0 0
    %124 = vmatprep.subr.bf16.mxu0 0
    %125 = vmatpush1.bf16.msra.mxu0 0
    %126 = vmatprep.subr.bf16.mxu0 0
    %127 = vmatpush1.bf16.msra.mxu0 0
    %128 = vmatprep.subr.bf16.mxu0 0
    %129 = vmatpush1.bf16.msra.mxu0 0
    %130 = vmatprep.subr.bf16.mxu0 0
    %131 = vmatpush1.bf16.msra.mxu0 0
    %132 = vmatprep.subr.bf16.mxu0 0
    %133 = vmatpush1.bf16.msra.mxu0 0
    %134 = vmatprep.subr.bf16.mxu0 0
    %135 = vmatpush1.bf16.msra.mxu0 0
    %136 = vmatprep.mubr.bf16.mxu0 0
    %137 = vmatmul.mubr.bf16.gmra.mrb[0].mxu0 %v93
    %v138 = vpop.f32.mrb[0].mxu0
    %v139 = vadd.f32 0.0, %v138
    %v140 = vpop.f32.mrb[0].mxu0
    %v141 = vpop.f32.mrb[0].mxu0
    %v142 = vadd.f32 0.0, %v141
    %v143 = vpop.f32.mrb[0].mxu0
    %144 = vmatprep.mubr.bf16.mxu0 0
    %145 = vmatmul.mubr.bf16.gmra.mrb[0].mxu0 %v96
    %v146 = vpop.f32.mrb[0].mxu0
    %v147 = vadd.f32 0.0, %v146
    %v148 = vpop.f32.mrb[0].mxu0
    %v149 = vpop.f32.mrb[0].mxu0
    %v150 = vadd.f32 0.0, %v149
    %v151 = vpop.f32.mrb[0].mxu0
    %152 = vmatprep.mubr.bf16.mxu0 0
    %153 = vmatmul.mubr.bf16.gmra.mrb[0].mxu0 %v99
    %v154 = vpop.f32.mrb[0].mxu0
    %v155 = vadd.f32 0.0, %v154
    %v156 = vpop.f32.mrb[0].mxu0
    %v157 = vpop.f32.mrb[0].mxu0
    %v158 = vadd.f32 0.0, %v157
    %v159 = vpop.f32.mrb[0].mxu0
    %160 = vmatprep.mubr.bf16.mxu0 0
    %161 = vmatmul.mubr.bf16.gmra.mrb[0].mxu0 %v102
    %v162 = vpop.f32.mrb[0].mxu0
    %v163 = vadd.f32 0.0, %v162
    %v164 = vpop.f32.mrb[0].mxu0
    %v165 = vpop.f32.mrb[0].mxu0
    %v166 = vadd.f32 0.0, %v165
    %v167 = vpop.f32.mrb[0].mxu0
    %168 = vdwg.mxu0
    %v169 = vpack.c.bf16 %v142, %v139
    %v170 = vpack.c.bf16 %v150, %v147
    %v171 = vpack.c.bf16 %v158, %v155
    %v172 = vpack.c.bf16 %v166, %v163
    %174 = vset.pattern.permute.xlu0 0
    %175 = vperm.xlu0 %174, %v36
    %v176 = vpop.permute.xlu0 %175
    %179 = vset.pattern.permute.xlu0 0
    %180 = vperm.xlu0 %179, %v37
    %v181 = vpop.permute.xlu0 %180
    %184 = vset.pattern.permute.xlu0 0
    %185 = vperm.xlu0 %184, %v38
    %v186 = vpop.permute.xlu0 %185
    %189 = vset.pattern.permute.xlu0 0
    %190 = vperm.xlu0 %189, %v39
    %v191 = vpop.permute.xlu0 %190
    %v193 = vadd.bf16 %v169, %v176
    %v194 = vadd.bf16 %v170, %v181
    %v195 = vadd.bf16 %v171, %v186
    %v196 = vadd.bf16 %v172, %v191
    %v197 = vmax.bf16 %v193, 0
    %v198 = vmax.bf16 %v194, 0
    %v199 = vmax.bf16 %v195, 0
    %v200 = vmax.bf16 %v196, 0
    %v201 = vld [vmem:[%s3] sm:$0xf]
    %v202 = vld [vmem:[%s3 + $0x4] sm:$0xf]
    %v203 = vld [vmem:[%s3 + $0x8] sm:$0xf]
    %v204 = vld [vmem:[%s3 + $0xc] sm:$0xf]
    %v209 = vunpack.c.l.b16 %v201
    %v210 = vunpack.c.l.b16 %v202
    %v211 = vunpack.c.l.b16 %v203
    %v212 = vunpack.c.l.b16 %v204
    %v213 = vpack.c.b16 %v210, %v209
    %v214 = vpack.c.b16 %v212, %v211
    %vm215 = vcmask 523264
    %v217 = vsel %vm215, %v213, 0
    %v220 = vsel %vm215, %v214, 0
    %222 = vmatprep.subr.bf16.mxu0 0
    %223 = vmatpush1.bf16.msra.mxu0 %v197
    %224 = vmatprep.subr.bf16.mxu0 0
    %225 = vmatpush1.bf16.msra.mxu0 %v198
    %226 = vmatprep.subr.bf16.mxu0 0
    %227 = vmatpush1.bf16.msra.mxu0 %v199
    %228 = vmatprep.subr.bf16.mxu0 0
    %229 = vmatpush1.bf16.msra.mxu0 %v200
    %230 = vmatprep.subr.bf16.mxu0 0
    %231 = vmatpush1.bf16.msra.mxu0 0
    %232 = vmatprep.subr.bf16.mxu0 0
    %233 = vmatpush1.bf16.msra.mxu0 0
    %234 = vmatprep.subr.bf16.mxu0 0
    %235 = vmatpush1.bf16.msra.mxu0 0
    %236 = vmatprep.subr.bf16.mxu0 0
    %237 = vmatpush1.bf16.msra.mxu0 0
    %238 = vmatprep.subr.bf16.mxu0 0
    %239 = vmatpush1.bf16.msra.mxu0 0
    %240 = vmatprep.subr.bf16.mxu0 0
    %241 = vmatpush1.bf16.msra.mxu0 0
    %242 = vmatprep.subr.bf16.mxu0 0
    %243 = vmatpush1.bf16.msra.mxu0 0
    %244 = vmatprep.subr.bf16.mxu0 0
    %245 = vmatpush1.bf16.msra.mxu0 0
    %246 = vmatprep.subr.bf16.mxu0 0
    %247 = vmatpush1.bf16.msra.mxu0 0
    %248 = vmatprep.subr.bf16.mxu0 0
    %249 = vmatpush1.bf16.msra.mxu0 0
    %250 = vmatprep.subr.bf16.mxu0 0
    %251 = vmatpush1.bf16.msra.mxu0 0
    %252 = vmatprep.subr.bf16.mxu0 0
    %253 = vmatpush1.bf16.msra.mxu0 0
    %254 = vmatprep.mubr.bf16.mxu0 0
    %255 = vmatmul.mubr.bf16.gmra.mrb[0].mxu0 %v217
    %v256 = vpop.f32.mrb[0].mxu0
    %v257 = vadd.f32 0.0, %v256
    %v258 = vpop.f32.mrb[0].mxu0
    %v259 = vpop.f32.mrb[0].mxu0
    %v260 = vadd.f32 0.0, %v259
    %v261 = vpop.f32.mrb[0].mxu0
    %262 = vmatprep.mubr.bf16.mxu0 0
    %263 = vmatmul.mubr.bf16.gmra.mrb[0].mxu0 %v220
    %v264 = vpop.f32.mrb[0].mxu0
    %v265 = vadd.f32 0.0, %v264
    %v266 = vpop.f32.mrb[0].mxu0
    %v267 = vpop.f32.mrb[0].mxu0
    %v268 = vadd.f32 0.0, %v267
    %v269 = vpop.f32.mrb[0].mxu0
    %270 = vdwg.mxu0
    %v271 = vpack.c.bf16 %v260, %v257
    %v272 = vpack.c.bf16 %v268, %v265
    %274 = vset.pattern.permute.xlu0 0
    %275 = vperm.xlu0 %274, %v44
    %v276 = vpop.permute.xlu0 %275
    %279 = vset.pattern.permute.xlu0 0
    %280 = vperm.xlu0 %279, %v45
    %v281 = vpop.permute.xlu0 %280
    %v283 = vadd.bf16 %v271, %v276
    %v284 = vadd.bf16 %v272, %v281
    %v285 = vmax.bf16 %v283, 0
    %v286 = vmax.bf16 %v284, 0
    %v287 = vld [vmem:[%s5] sm:$0x1]
    %289 = vset.pattern.permute.xlu0 0
    %290 = vperm.xlu0 %289, %v46
    %v291 = vpop.permute.xlu0 %290
    %v294 = vsel %vm91, %v287, 0
    %296 = vmatprep.subr.bf16.mxu0 0
    %297 = vmatpush1.bf16.msra.mxu0 %v285
    %298 = vmatprep.subr.bf16.mxu0 0
    %299 = vmatpush1.bf16.msra.mxu0 %v286
    %300 = vmatprep.subr.bf16.mxu0 0
    %301 = vmatpush1.bf16.msra.mxu0 0
    %302 = vmatprep.subr.bf16.mxu0 0
    %303 = vmatpush1.bf16.msra.mxu0 0
    %304 = vmatprep.subr.bf16.mxu0 0
    %305 = vmatpush1.bf16.msra.mxu0 0
    %306 = vmatprep.subr.bf16.mxu0 0
    %307 = vmatpush1.bf16.msra.mxu0 0
    %308 = vmatprep.subr.bf16.mxu0 0
    %309 = vmatpush1.bf16.msra.mxu0 0
    %310 = vmatprep.subr.bf16.mxu0 0
    %311 = vmatpush1.bf16.msra.mxu0 0
    %312 = vmatprep.subr.bf16.mxu0 0
    %313 = vmatpush1.bf16.msra.mxu0 0
    %314 = vmatprep.subr.bf16.mxu0 0
    %315 = vmatpush1.bf16.msra.mxu0 0
    %316 = vmatprep.subr.bf16.mxu0 0
    %317 = vmatpush1.bf16.msra.mxu0 0
    %318 = vmatprep.subr.bf16.mxu0 0
    %319 = vmatpush1.bf16.msra.mxu0 0
    %320 = vmatprep.subr.bf16.mxu0 0
    %321 = vmatpush1.bf16.msra.mxu0 0
    %322 = vmatprep.subr.bf16.mxu0 0
    %323 = vmatpush1.bf16.msra.mxu0 0
    %324 = vmatprep.subr.bf16.mxu0 0
    %325 = vmatpush1.bf16.msra.mxu0 0
    %326 = vmatprep.subr.bf16.mxu0 0
    %327 = vmatpush1.bf16.msra.mxu0 0
    %328 = vmatprep.mubr.bf16.mxu0 0
    %329 = vmatmul.mubr.bf16.gmra.mrb[0].mxu0 %v294
    %v330 = vpop.f32.mrb[0].mxu0
    %v331 = vadd.f32 %v291, %v330
    %v332 = vpop.f32.mrb[0].mxu0
    %v333 = vpop.f32.mrb[0].mxu0
    %v334 = vpop.f32.mrb[0].mxu0
    %335 = vdwg.mxu0
    %336 = vst [vmem:[#allocation2] sm:$0x3] %v331
    // Predicated region
    $region30: #{tpu_custom_call.1} parent=1 // pred_check
      _
    $region31: #{tpu_custom_call.1} parent=1 // pred_check_branch
      %338 = sbr.rel (0) target = $region33
    $region32: #{tpu_custom_call.1} parent=1 // pred_region
      %s340 = ssub.s32 32, 32
      %341 = vsyncadd [#allocation3], %s340
      %s343 = sshll.u32 [#allocation2], 4
      %s344 = int_to_ptr.vmem [resolvable:$true] %s343
      %346 = dma.vmem_to_hbm [thread:$0]  %s344, 32, %s7, [#allocation3]
    $region33: #{tpu_custom_call.1} parent=1 // pred_fallthru
      _
    // Predicated region
    $region34: #{tpu_custom_call.1} parent=1 // pred_check
      _
    $region35: #{tpu_custom_call.1} parent=1 // pred_check_branch
      %348 = sbr.rel (0) target = $region37
    $region36: #{tpu_custom_call.1} parent=1 // pred_region
      %349 = dma.done [#allocation3], 32
    $region37: #{tpu_custom_call.1} parent=1 // pred_fallthru
      _
    %350 = vsyncpa [#allocation3], 1

</llo_original>
